<compile_context>
chip_gen: v5e
topology: v5e:2x2
jax: 0.10.0
libtpu: 0.0.40
codegen_flags: <defaults>
</compile_context>

<pallas_src>
from functools import partial

import jax
import jax.numpy as jnp
import numpy as np
from jax.experimental import pallas as pl
from jax.experimental.pallas import tpu as pltpu


def _attn_kernel(x_ref, w_ref, b_ref, o_ref, *, batch, seq, dim):
    # Whole problem in one grid step: x is (B, S, D); flatten leading dims so a
    # single MXU matmul covers every projection for every batch element.
    x = x_ref[...]                                                # (B, S, D)
    x2d = x.reshape(batch * seq, dim)                             # (B*S, D)

    # Packed weights: [wq * sqrt(D), wk, wv, wo]; biases likewise.
    wq, wk, wv, wo = w_ref[0], w_ref[1], w_ref[2], w_ref[3]       # (D, D) each
    bq, bk, bv, bo = b_ref[0], b_ref[1], b_ref[2], b_ref[3]       # (1, D) each

    q = (jnp.dot(x2d, wq, preferred_element_type=jnp.float32) + bq)
    k = (jnp.dot(x2d, wk, preferred_element_type=jnp.float32) + bk)
    v = (jnp.dot(x2d, wv, preferred_element_type=jnp.float32) + bv)
    q = q.reshape(batch, seq, dim)
    k = k.reshape(batch, seq, dim)
    v = v.reshape(batch, seq, dim)

    # num_heads == 1 and seq == in_dim => the reference's head-split view is an
    # identity reshape; attention reduces to per-batch (S, S) scores.
    # The reference's qk.div(1/sqrt(d)) == qk * sqrt(d); that scale is already
    # folded into wq/bq at pack time, so scores need no extra multiply here.
    s = jnp.einsum('bqd,bkd->bqk', q, k,
                   preferred_element_type=jnp.float32)            # (B, S, S)

    # Numerically stable softmax; exact reciprocal + VPU multiply.
    m = jnp.max(s, axis=-1, keepdims=True)
    e = jnp.exp(s - m)
    inv = pl.reciprocal(jnp.sum(e, axis=-1, keepdims=True), approx=False)
    p = e * inv

    # TODO(synk): nn.Dropout is identity at inference (eval / p=0); no RNG masking.
    out = jnp.einsum('bqk,bkd->bqd', p, v,
                     preferred_element_type=jnp.float32)          # (B, S, D)

    out2d = out.reshape(batch * seq, dim)
    o = jnp.dot(out2d, wo, preferred_element_type=jnp.float32) + bo
    o_ref[...] = o.reshape(batch, seq, dim).astype(o_ref.dtype)


def pack_params(params, in_dim):
    """One-time packing: stack weights (4, D, D) / biases (4, 1, D); fold sqrt(D)
    score scale into the Q projection."""
    wq, bq, wk, bk, wv, bv, wo, bo = params
    scale = float(in_dim) ** 0.5
    w_packed = jnp.stack([wq * scale, wk, wv, wo], axis=0)        # (4, D, D)
    b_packed = jnp.stack([bq * scale, bk, bv, bo], axis=0)        # (4, 1, D)
    return w_packed, b_packed


@jax.jit
def model_forward(x, w_packed, b_packed):
    B, S, D = x.shape
    kernel = partial(_attn_kernel, batch=B, seq=S, dim=D)
    vmem_spec = pl.BlockSpec(memory_space=pltpu.MemorySpace.VMEM)
    return pl.pallas_call(
        kernel,
        out_shape=jax.ShapeDtypeStruct((B, S, D), x.dtype),
        in_specs=[vmem_spec] * 3,
        out_specs=vmem_spec,
    )(x, w_packed, b_packed)


def _init_linear(key, fan_in, fan_out):
    """torch.nn.Linear-style deterministic init: U(-1/sqrt(fan_in), 1/sqrt(fan_in))."""
    kw, kb = jax.random.split(key)
    bound = 1.0 / np.sqrt(fan_in)
    # Stored pre-transposed: (in_features, out_features).
    w = jax.random.uniform(kw, (fan_in, fan_out), jnp.float32, -bound, bound)
    b = jax.random.uniform(kb, (1, fan_out), jnp.float32, -bound, bound)
    return w, b


def _ref_forward(x, params, *, num_heads):
    """Pure-JAX replica of the PyTorch forward (for verification, uses the
    original unpacked/unscaled params)."""
    wq, bq, wk, bk, wv, bv, wo, bo = params
    B, S, D = x.shape
    H = num_heads
    hd = D // H
    q = (x @ wq + bq).reshape(B, H, hd, D)
    k = (x @ wk + bk).reshape(B, H, hd, D)
    v = (x @ wv + bv).reshape(B, H, hd, D)
    qk = jnp.einsum("bhid,bhjd->bhij", q, k)
    inv_scale = 1.0 / float(D) ** 0.5
    scaled = qk / inv_scale
    p = jax.nn.softmax(scaled, axis=-1)
    out = jnp.einsum("bhij,bhjd->bhid", p, v).reshape(B, -1, D)
    return out @ wo + bo


if __name__ == "__main__":
    B, S, D = 2, 32, 32          # seq == in_dim required by the forward's .view
    num_heads = 1                # only shape-consistent head count
    dropout_p = 0.0              # dropout is identity (eval)

    key = jax.random.PRNGKey(0)
    kx, kq, kk, kv, ko = jax.random.split(key, 5)

    x = jax.random.normal(kx, (B, S, D), jnp.float32)

    scaled_in_dim = D * num_heads
    wq, bq = _init_linear(kq, D, scaled_in_dim)
    wk, bk = _init_linear(kk, D, scaled_in_dim)
    wv, bv = _init_linear(kv, D, scaled_in_dim)
    wo, bo = _init_linear(ko, scaled_in_dim, D)
    params = (wq, bq, wk, bk, wv, bv, wo, bo)

    # One-time packing (outside the forward path).
    w_packed, b_packed = pack_params(params, D)

    out = model_forward(x, w_packed, b_packed)
    out = jax.block_until_ready(out)

    ref = _ref_forward(x, params, num_heads=num_heads)
    np.testing.assert_allclose(np.asarray(out), np.asarray(ref),
                               rtol=1e-5, atol=1e-5)
    print("KERNEL_OK")
</pallas_src>

<mosaic_0001>
module attributes {stable_mosaic.version = 11 : i64} {
  func.func @_attn_kernel(%arg0: memref<2x32x32xf32, #tpu.memory_space<vmem>>, %arg1: memref<4x32x32xf32, #tpu.memory_space<vmem>>, %arg2: memref<4x1x32xf32, #tpu.memory_space<vmem>>, %arg3: memref<2x32x32xf32, #tpu.memory_space<vmem>>) attributes {dimension_semantics = [], scalar_prefetch = 0 : i64, scratch_operands = 0 : i64, tpu.core_type = #tpu.core_type<tc>} {
    %c0 = arith.constant 0 : index
    %c0_0 = arith.constant 0 : index
    %c0_1 = arith.constant 0 : index
    %0 = vector.load %arg0[%c0, %c0_0, %c0_1] : memref<2x32x32xf32, #tpu.memory_space<vmem>>, vector<2x32x32xf32>
    %1 = vector.shape_cast %0 : vector<2x32x32xf32> to vector<64x32xf32>
    %c0_2 = arith.constant 0 : index
    %c0_3 = arith.constant 0 : index
    %c0_4 = arith.constant 0 : index
    %2 = vector.load %arg1[%c0_2, %c0_3, %c0_4] : memref<4x32x32xf32, #tpu.memory_space<vmem>>, vector<1x32x32xf32>
    %3 = vector.shape_cast %2 : vector<1x32x32xf32> to vector<32x32xf32>
    %c1 = arith.constant 1 : index
    %c0_5 = arith.constant 0 : index
    %c0_6 = arith.constant 0 : index
    %4 = vector.load %arg1[%c1, %c0_5, %c0_6] : memref<4x32x32xf32, #tpu.memory_space<vmem>>, vector<1x32x32xf32>
    %5 = vector.shape_cast %4 : vector<1x32x32xf32> to vector<32x32xf32>
    %c2 = arith.constant 2 : index
    %c0_7 = arith.constant 0 : index
    %c0_8 = arith.constant 0 : index
    %6 = vector.load %arg1[%c2, %c0_7, %c0_8] : memref<4x32x32xf32, #tpu.memory_space<vmem>>, vector<1x32x32xf32>
    %7 = vector.shape_cast %6 : vector<1x32x32xf32> to vector<32x32xf32>
    %c3 = arith.constant 3 : index
    %c0_9 = arith.constant 0 : index
    %c0_10 = arith.constant 0 : index
    %8 = vector.load %arg1[%c3, %c0_9, %c0_10] : memref<4x32x32xf32, #tpu.memory_space<vmem>>, vector<1x32x32xf32>
    %9 = vector.shape_cast %8 : vector<1x32x32xf32> to vector<32x32xf32>
    %c0_11 = arith.constant 0 : index
    %c0_12 = arith.constant 0 : index
    %c0_13 = arith.constant 0 : index
    %10 = vector.load %arg2[%c0_11, %c0_12, %c0_13] : memref<4x1x32xf32, #tpu.memory_space<vmem>>, vector<1x1x32xf32>
    %11 = vector.shape_cast %10 : vector<1x1x32xf32> to vector<1x32xf32>
    %c1_14 = arith.constant 1 : index
    %c0_15 = arith.constant 0 : index
    %c0_16 = arith.constant 0 : index
    %12 = vector.load %arg2[%c1_14, %c0_15, %c0_16] : memref<4x1x32xf32, #tpu.memory_space<vmem>>, vector<1x1x32xf32>
    %13 = vector.shape_cast %12 : vector<1x1x32xf32> to vector<1x32xf32>
    %c2_17 = arith.constant 2 : index
    %c0_18 = arith.constant 0 : index
    %c0_19 = arith.constant 0 : index
    %14 = vector.load %arg2[%c2_17, %c0_18, %c0_19] : memref<4x1x32xf32, #tpu.memory_space<vmem>>, vector<1x1x32xf32>
    %15 = vector.shape_cast %14 : vector<1x1x32xf32> to vector<1x32xf32>
    %c3_20 = arith.constant 3 : index
    %c0_21 = arith.constant 0 : index
    %c0_22 = arith.constant 0 : index
    %16 = vector.load %arg2[%c3_20, %c0_21, %c0_22] : memref<4x1x32xf32, #tpu.memory_space<vmem>>, vector<1x1x32xf32>
    %17 = vector.shape_cast %16 : vector<1x1x32xf32> to vector<1x32xf32>
    %cst = arith.constant dense<0.000000e+00> : vector<64x32xf32>
    %18 = tpu.matmul %1, %3, %cst {dimension_numbers = #tpu.dot_dimension_numbers<[1], [0], [0], [1], [0, 0, 1, 1], [], []>} : vector<64x32xf32>, vector<32x32xf32>, vector<64x32xf32> -> vector<64x32xf32>
    %19 = vector.broadcast %11 : vector<1x32xf32> to vector<64x32xf32>
    %20 = arith.addf %18, %19 : vector<64x32xf32>
    %cst_23 = arith.constant dense<0.000000e+00> : vector<64x32xf32>
    %21 = tpu.matmul %1, %5, %cst_23 {dimension_numbers = #tpu.dot_dimension_numbers<[1], [0], [0], [1], [0, 0, 1, 1], [], []>} : vector<64x32xf32>, vector<32x32xf32>, vector<64x32xf32> -> vector<64x32xf32>
    %22 = vector.broadcast %13 : vector<1x32xf32> to vector<64x32xf32>
    %23 = arith.addf %21, %22 : vector<64x32xf32>
    %cst_24 = arith.constant dense<0.000000e+00> : vector<64x32xf32>
    %24 = tpu.matmul %1, %7, %cst_24 {dimension_numbers = #tpu.dot_dimension_numbers<[1], [0], [0], [1], [0, 0, 1, 1], [], []>} : vector<64x32xf32>, vector<32x32xf32>, vector<64x32xf32> -> vector<64x32xf32>
    %25 = vector.broadcast %15 : vector<1x32xf32> to vector<64x32xf32>
    %26 = arith.addf %24, %25 : vector<64x32xf32>
    %27 = vector.shape_cast %20 : vector<64x32xf32> to vector<2x32x32xf32>
    %28 = vector.shape_cast %23 : vector<64x32xf32> to vector<2x32x32xf32>
    %29 = vector.shape_cast %26 : vector<64x32xf32> to vector<2x32x32xf32>
    "tpu.trace_start"() <{level = 10 : i32, message = "bqd,bkd->bqk"}> : () -> ()
    %cst_25 = arith.constant dense<0.000000e+00> : vector<2x32x32xf32>
    %30 = tpu.matmul %27, %28, %cst_25 {dimension_numbers = #tpu.dot_dimension_numbers<[2], [2], [1], [1], [0, 0, 0, 1, 1, 1], [0], [0]>} : vector<2x32x32xf32>, vector<2x32x32xf32>, vector<2x32x32xf32> -> vector<2x32x32xf32>
    "tpu.trace_stop"() : () -> ()
    %cst_26 = arith.constant dense<0xFF800000> : vector<2x32xf32>
    %31 = vector.multi_reduction <maximumf>, %30, %cst_26 [2] : vector<2x32x32xf32> to vector<2x32xf32>
    %32 = vector.shape_cast %31 : vector<2x32xf32> to vector<2x32x1xf32>
    %33 = vector.broadcast %32 : vector<2x32x1xf32> to vector<2x32x32xf32>
    %34 = arith.subf %30, %33 : vector<2x32x32xf32>
    %35 = math.exp %34 : vector<2x32x32xf32>
    %cst_27 = arith.constant dense<0.000000e+00> : vector<2x32xf32>
    %36 = vector.multi_reduction <add>, %35, %cst_27 [2] : vector<2x32x32xf32> to vector<2x32xf32>
    %37 = vector.shape_cast %36 : vector<2x32xf32> to vector<2x32x1xf32>
    %38 = tpu.reciprocal %37 : vector<2x32x1xf32> -> vector<2x32x1xf32>
    %39 = vector.broadcast %38 : vector<2x32x1xf32> to vector<2x32x32xf32>
    %40 = arith.mulf %35, %39 : vector<2x32x32xf32>
    "tpu.trace_start"() <{level = 10 : i32, message = "bqk,bkd->bqd"}> : () -> ()
    %cst_28 = arith.constant dense<0.000000e+00> : vector<2x32x32xf32>
    %41 = tpu.matmul %40, %29, %cst_28 {dimension_numbers = #tpu.dot_dimension_numbers<[2], [1], [1], [2], [0, 0, 0, 1, 1, 2], [0], [0]>} : vector<2x32x32xf32>, vector<2x32x32xf32>, vector<2x32x32xf32> -> vector<2x32x32xf32>
    "tpu.trace_stop"() : () -> ()
    %42 = vector.shape_cast %41 : vector<2x32x32xf32> to vector<64x32xf32>
    %cst_29 = arith.constant dense<0.000000e+00> : vector<64x32xf32>
    %43 = tpu.matmul %42, %9, %cst_29 {dimension_numbers = #tpu.dot_dimension_numbers<[1], [0], [0], [1], [0, 0, 1, 1], [], []>} : vector<64x32xf32>, vector<32x32xf32>, vector<64x32xf32> -> vector<64x32xf32>
    %44 = vector.broadcast %17 : vector<1x32xf32> to vector<64x32xf32>
    %45 = arith.addf %43, %44 : vector<64x32xf32>
    %46 = vector.shape_cast %45 : vector<64x32xf32> to vector<2x32x32xf32>
    %c0_30 = arith.constant 0 : index
    %c0_31 = arith.constant 0 : index
    %c0_32 = arith.constant 0 : index
    %47 = vector.load %arg3[%c0_30, %c0_31, %c0_32] : memref<2x32x32xf32, #tpu.memory_space<vmem>>, vector<2x32x32xf32>
    tpu.vector_store %arg3[%c0_30, %c0_31, %c0_32], %46 {strides = array<i32>} : memref<2x32x32xf32, #tpu.memory_space<vmem>>, vector<2x32x32xf32>,
    return
  }
}

</mosaic_0001>

<llo_original>
// kernel: model_forward.1
$region0: #{model_forward.1}
  #allocation0 [shape = 'u32[]', space=smem, size = 0x4, offset = 0x4, fixed_abs, tag = 'smem constant byte address 0x4 - core index']
  #allocation1 [shape = 'u32[72,128]{1,0:T(1,128)}', space=vmem, size = 0x9000, scoped, tag = 'internal scratch']
  %s0 = inlined_call_operand.hbm [shape: f32[2,32,32], index: 0, kind: input, shape index: {}]
  %s1 = inlined_call_operand.hbm [shape: f32[4,32,32], index: 1, kind: input, shape index: {}]
  %s2 = inlined_call_operand.hbm [shape: f32[4,1,32], index: 2, kind: input, shape index: {}]
  %s3 = inlined_call_operand.hbm [shape: f32[2,32,32], index: 3, kind: output, shape index: {}]
  %s4 = sld [smem:[#allocation0]]
  $region34: #{model_forward.1} parent=0
    _
  %s6 = ssub.s32 1, %s4
  %s7 = scalar_select 0, %s6, %s4
  $region1: #{model_forward.1} parent=0
    #allocation2 [shape = 'u8[32768]{0}', space=vmem, size = 0x8000, scoped, tag = 'input window, operand 0, single buffered']
    #allocation3 [shape = 's32[1]{0}', space=sflag, size = 0x4, scoped, tag = 'scoped memory for model_forward.1']
    #allocation4 [shape = 's32[1]{0}', space=sflag, size = 0x4, scoped, tag = 'scoped memory for model_forward.1']
    #allocation5 [shape = 'u8[65536]{0}', space=vmem, size = 0x10000, scoped, tag = 'input window, operand 1, single buffered']
    #allocation6 [shape = 's32[1]{0}', space=sflag, size = 0x4, scoped, tag = 'scoped memory for model_forward.1']
    #allocation7 [shape = 'u8[2048]{0}', space=vmem, size = 0x800, scoped, tag = 'input window, operand 2, single buffered']
    #allocation8 [shape = 'u8[32768]{0}', space=vmem, size = 0x8000, scoped, tag = 'output window, operand 0, single buffered']
    %8 = vsyncpa [#allocation3], 0
    %9 = vsyncpa [#allocation6], 0
    %10 = vsyncpa [#allocation4], 0
    // Predicated region
    $region2: #{model_forward.1} parent=1 // pred_check
      _
    $region3: #{model_forward.1} parent=1 // pred_check_branch
      %12 = sbr.rel (0) target = $region5
    $region4: #{model_forward.1} parent=1 // pred_region
      %14 = vsyncadd [#allocation3], 0
      %s15 = sshll.u32 %s0, 4
      %s16 = int_to_ptr.hbm [resolvable:$true] %s15
      %s17 = sshll.u32 [#allocation2], 4
      %s18 = int_to_ptr.vmem [resolvable:$true] %s17
      %23 = dma.hbm_to_vmem [thread:$0]  %s16, 1024, %s18, [#allocation3], 128, 128, 8
    $region5: #{model_forward.1} parent=1 // pred_fallthru
      _
    // Predicated region
    $region6: #{model_forward.1} parent=1 // pred_check
      _
    $region7: #{model_forward.1} parent=1 // pred_check_branch
      %25 = sbr.rel (0) target = $region9
    $region8: #{model_forward.1} parent=1 // pred_region
      %27 = vsyncadd [#allocation6], 0
      %s28 = sshll.u32 %s1, 4
      %s29 = int_to_ptr.hbm [resolvable:$true] %s28
      %s30 = sshll.u32 [#allocation5], 4
      %s31 = int_to_ptr.vmem [resolvable:$true] %s30
      %36 = dma.hbm_to_vmem [thread:$0]  %s29, 2048, %s31, [#allocation6], 128, 128, 8
    $region9: #{model_forward.1} parent=1 // pred_fallthru
      _
    // Predicated region
    $region10: #{model_forward.1} parent=1 // pred_check
      _
    $region11: #{model_forward.1} parent=1 // pred_check_branch
      %38 = sbr.rel (0) target = $region13
    $region12: #{model_forward.1} parent=1 // pred_region
      %40 = vsyncadd [#allocation6], 0
      %s41 = sshll.u32 %s2, 4
      %s42 = int_to_ptr.hbm [resolvable:$true] %s41
      %s43 = sshll.u32 [#allocation7], 4
      %s44 = int_to_ptr.vmem [resolvable:$true] %s43
      %49 = dma.hbm_to_vmem [thread:$0]  %s42, 64, %s44, [#allocation6], 16, 16, 1
    $region13: #{model_forward.1} parent=1 // pred_fallthru
      _
    // Predicated region
    $region14: #{model_forward.1} parent=1 // pred_check
      _
    $region15: #{model_forward.1} parent=1 // pred_check_branch
      %51 = sbr.rel (0) target = $region17
    $region16: #{model_forward.1} parent=1 // pred_region
      %53 = dma.done [#allocation3], 1024
    $region17: #{model_forward.1} parent=1 // pred_fallthru
      _
    // Predicated region
    $region18: #{model_forward.1} parent=1 // pred_check
      _
    $region19: #{model_forward.1} parent=1 // pred_check_branch
      %55 = sbr.rel (0) target = $region21
    $region20: #{model_forward.1} parent=1 // pred_region
      %57 = dma.done [#allocation6], 2048
    $region21: #{model_forward.1} parent=1 // pred_fallthru
      _
    // Predicated region
    $region22: #{model_forward.1} parent=1 // pred_check
      _
    $region23: #{model_forward.1} parent=1 // pred_check_branch
      %59 = sbr.rel (0) target = $region25
    $region24: #{model_forward.1} parent=1 // pred_region
      %61 = dma.done [#allocation6], 64
    $region25: #{model_forward.1} parent=1 // pred_fallthru
      _
    %v62 = vld [vmem:[#allocation2] sm:$0xff]
    %v63 = vld [vmem:[#allocation2 + $0x8] sm:$0xff]
    %v64 = vld [vmem:[#allocation2 + $0x10] sm:$0xff]
    %v65 = vld [vmem:[#allocation2 + $0x18] sm:$0xff]
    %v66 = vld [vmem:[#allocation2 + $0x20] sm:$0xff]
    %v67 = vld [vmem:[#allocation2 + $0x28] sm:$0xff]
    %v68 = vld [vmem:[#allocation2 + $0x30] sm:$0xff]
    %v69 = vld [vmem:[#allocation2 + $0x38] sm:$0xff]
    %v70 = vld [vmem:[#allocation5] sm:$0xff]
    %v71 = vld [vmem:[#allocation5 + $0x8] sm:$0xff]
    %v72 = vld [vmem:[#allocation5 + $0x10] sm:$0xff]
    %v73 = vld [vmem:[#allocation5 + $0x18] sm:$0xff]
    %s74 = scalar_lea.vmem [#allocation5], 32
    %v75 = vld [vmem:[%s74] sm:$0xff]
    %v76 = vld [vmem:[%s74 + $0x8] sm:$0xff]
    %v77 = vld [vmem:[%s74 + $0x10] sm:$0xff]
    %v78 = vld [vmem:[%s74 + $0x18] sm:$0xff]
    %s79 = scalar_lea.vmem [#allocation5], 64
    %v80 = vld [vmem:[%s79] sm:$0xff]
    %v81 = vld [vmem:[%s79 + $0x8] sm:$0xff]
    %v82 = vld [vmem:[%s79 + $0x10] sm:$0xff]
    %v83 = vld [vmem:[%s79 + $0x18] sm:$0xff]
    %s84 = scalar_lea.vmem [#allocation5], 96
    %v85 = vld [vmem:[%s84] sm:$0xff]
    %v86 = vld [vmem:[%s84 + $0x8] sm:$0xff]
    %v87 = vld [vmem:[%s84 + $0x10] sm:$0xff]
    %v88 = vld [vmem:[%s84 + $0x18] sm:$0xff]
    %v89 = vld [vmem:[#allocation7] sm:$0x1]
    %s90 = scalar_lea.vmem [#allocation7], 1
    %v91 = vld [vmem:[%s90] sm:$0x1]
    %s92 = scalar_lea.vmem [#allocation7], 2
    %v93 = vld [vmem:[%s92] sm:$0x1]
    %s94 = scalar_lea.vmem [#allocation7], 3
    %v95 = vld [vmem:[%s94] sm:$0x1]
    %v97 = vperm.slane %v89, 0
    %vm99 = vcmask 261120
    %v101 = vsel %vm99, %v62, 0
    %v104 = vsel %vm99, %v63, 0
    %v107 = vsel %vm99, %v64, 0
    %v110 = vsel %vm99, %v65, 0
    %v113 = vsel %vm99, %v66, 0
    %v116 = vsel %vm99, %v67, 0
    %v119 = vsel %vm99, %v68, 0
    %v122 = vsel %vm99, %v69, 0
    %124 = vmatpush.msra.mxu0 0.0
    %125 = vmatpush.msra.mxu0 0.0
    %126 = vmatpush.msra.mxu0 0.0
    %127 = vmatpush.msra.mxu0 0.0
    %128 = vmatpush.msra.mxu0 0.0
    %129 = vmatpush.msra.mxu0 0.0
    %130 = vmatpush.msra.mxu0 0.0
    %131 = vmatpush.msra.mxu0 0.0
    %132 = vmatpush.msra.mxu0 0.0
    %133 = vmatpush.msra.mxu0 0.0
    %134 = vmatpush.msra.mxu0 0.0
    %135 = vmatpush.msra.mxu0 0.0
    %136 = vmatpush.msra.mxu0 %v73
    %137 = vmatpush.msra.mxu0 %v72
    %138 = vmatpush.msra.mxu0 %v71
    %139 = vmatpush.msra.mxu0 %v70
    %140 = vmatmul.f32.gmra.mxu0 %v101
    %v141 = vpop.f32.mrf.mxu0
    %v142 = vadd.f32 %v97, %v141
    %143 = vmatmul.f32.gmra.mxu0 %v104
    %v144 = vpop.f32.mrf.mxu0
    %v145 = vadd.f32 %v97, %v144
    %146 = vmatmul.f32.gmra.mxu0 %v107
    %v147 = vpop.f32.mrf.mxu0
    %v148 = vadd.f32 %v97, %v147
    %149 = vmatmul.f32.gmra.mxu0 %v110
    %v150 = vpop.f32.mrf.mxu0
    %v151 = vadd.f32 %v97, %v150
    %152 = vmatmul.f32.gmra.mxu0 %v113
    %v153 = vpop.f32.mrf.mxu0
    %v154 = vadd.f32 %v97, %v153
    %155 = vmatmul.f32.gmra.mxu0 %v116
    %v156 = vpop.f32.mrf.mxu0
    %v157 = vadd.f32 %v97, %v156
    %158 = vmatmul.f32.gmra.mxu0 %v119
    %v159 = vpop.f32.mrf.mxu0
    %v160 = vadd.f32 %v97, %v159
    %161 = vmatmul.f32.gmra.mxu0 %v122
    %v162 = vpop.f32.mrf.mxu0
    %v163 = vadd.f32 %v97, %v162
    %164 = vdwg.mxu0
    %v166 = vperm.slane %v91, 0
    %168 = vmatpush.msra.mxu0 0.0
    %169 = vmatpush.msra.mxu0 0.0
    %170 = vmatpush.msra.mxu0 0.0
    %171 = vmatpush.msra.mxu0 0.0
    %172 = vmatpush.msra.mxu0 0.0
    %173 = vmatpush.msra.mxu0 0.0
    %174 = vmatpush.msra.mxu0 0.0
    %175 = vmatpush.msra.mxu0 0.0
    %176 = vmatpush.msra.mxu0 0.0
    %177 = vmatpush.msra.mxu0 0.0
    %178 = vmatpush.msra.mxu0 0.0
    %179 = vmatpush.msra.mxu0 0.0
    %180 = vmatpush.msra.mxu0 %v78
    %181 = vmatpush.msra.mxu0 %v77
    %182 = vmatpush.msra.mxu0 %v76
    %183 = vmatpush.msra.mxu0 %v75
    %184 = vmatmul.f32.gmra.mxu0 %v101
    %v185 = vpop.f32.mrf.mxu0
    %v186 = vadd.f32 %v166, %v185
    %187 = vmatmul.f32.gmra.mxu0 %v104
    %v188 = vpop.f32.mrf.mxu0
    %v189 = vadd.f32 %v166, %v188
    %190 = vmatmul.f32.gmra.mxu0 %v107
    %v191 = vpop.f32.mrf.mxu0
    %v192 = vadd.f32 %v166, %v191
    %193 = vmatmul.f32.gmra.mxu0 %v110
    %v194 = vpop.f32.mrf.mxu0
    %v195 = vadd.f32 %v166, %v194
    %196 = vmatmul.f32.gmra.mxu0 %v113
    %v197 = vpop.f32.mrf.mxu0
    %v198 = vadd.f32 %v166, %v197
    %199 = vmatmul.f32.gmra.mxu0 %v116
    %v200 = vpop.f32.mrf.mxu0
    %v201 = vadd.f32 %v166, %v200
    %202 = vmatmul.f32.gmra.mxu0 %v119
    %v203 = vpop.f32.mrf.mxu0
    %v204 = vadd.f32 %v166, %v203
    %205 = vmatmul.f32.gmra.mxu0 %v122
    %v206 = vpop.f32.mrf.mxu0
    %v207 = vadd.f32 %v166, %v206
    %208 = vdwg.mxu0
    %v210 = vperm.slane %v93, 0
    %212 = vmatpush.msra.mxu0 0.0
    %213 = vmatpush.msra.mxu0 0.0
    %214 = vmatpush.msra.mxu0 0.0
    %215 = vmatpush.msra.mxu0 0.0
    %216 = vmatpush.msra.mxu0 0.0
    %217 = vmatpush.msra.mxu0 0.0
    %218 = vmatpush.msra.mxu0 0.0
    %219 = vmatpush.msra.mxu0 0.0
    %220 = vmatpush.msra.mxu0 0.0
    %221 = vmatpush.msra.mxu0 0.0
    %222 = vmatpush.msra.mxu0 0.0
    %223 = vmatpush.msra.mxu0 0.0
    %224 = vmatpush.msra.mxu0 %v83
    %225 = vmatpush.msra.mxu0 %v82
    %226 = vmatpush.msra.mxu0 %v81
    %227 = vmatpush.msra.mxu0 %v80
    %228 = vmatmul.f32.gmra.mxu0 %v101
    %v229 = vpop.f32.mrf.mxu0
    %v230 = vadd.f32 %v210, %v229
    %231 = vmatmul.f32.gmra.mxu0 %v104
    %v232 = vpop.f32.mrf.mxu0
    %v233 = vadd.f32 %v210, %v232
    %234 = vmatmul.f32.gmra.mxu0 %v107
    %v235 = vpop.f32.mrf.mxu0
    %v236 = vadd.f32 %v210, %v235
    %237 = vmatmul.f32.gmra.mxu0 %v110
    %v238 = vpop.f32.mrf.mxu0
    %v239 = vadd.f32 %v210, %v238
    %240 = vmatmul.f32.gmra.mxu0 %v113
    %v241 = vpop.f32.mrf.mxu0
    %v242 = vadd.f32 %v210, %v241
    %243 = vmatmul.f32.gmra.mxu0 %v116
    %v244 = vpop.f32.mrf.mxu0
    %v245 = vadd.f32 %v210, %v244
    %246 = vmatmul.f32.gmra.mxu0 %v119
    %v247 = vpop.f32.mrf.mxu0
    %v248 = vadd.f32 %v210, %v247
    %249 = vmatmul.f32.gmra.mxu0 %v122
    %v250 = vpop.f32.mrf.mxu0
    %v251 = vadd.f32 %v210, %v250
    %252 = vdwg.mxu0
    %v254 = vsel %vm99, %v142, 0
    %v257 = vsel %vm99, %v145, 0
    %v260 = vsel %vm99, %v148, 0
    %v263 = vsel %vm99, %v151, 0
    %v266 = vsel %vm99, %v186, 0
    %v269 = vsel %vm99, %v189, 0
    %v272 = vsel %vm99, %v192, 0
    %v275 = vsel %vm99, %v195, 0
    %277 = vmatpush.xpose.msra.mxu0 0.0
    %278 = vmatpush.xpose.msra.mxu0 0.0
    %279 = vmatpush.xpose.msra.mxu0 0.0
    %280 = vmatpush.xpose.msra.mxu0 0.0
    %281 = vmatpush.xpose.msra.mxu0 0.0
    %282 = vmatpush.xpose.msra.mxu0 0.0
    %283 = vmatpush.xpose.msra.mxu0 0.0
    %284 = vmatpush.xpose.msra.mxu0 0.0
    %285 = vmatpush.xpose.msra.mxu0 0.0
    %286 = vmatpush.xpose.msra.mxu0 0.0
    %287 = vmatpush.xpose.msra.mxu0 0.0
    %288 = vmatpush.xpose.msra.mxu0 0.0
    %289 = vmatpush.xpose.msra.mxu0 %v275
    %290 = vmatpush.xpose.msra.mxu0 %v272
    %291 = vmatpush.xpose.msra.mxu0 %v269
    %292 = vmatpush.xpose.msra.mxu0 %v266
    %293 = vmatmul.f32.gmra.mxu0 %v254
    %v294 = vpop.f32.mrf.mxu0
    %v295 = vadd.f32 0.0, %v294
    %296 = vmatmul.f32.gmra.mxu0 %v257
    %v297 = vpop.f32.mrf.mxu0
    %v298 = vadd.f32 0.0, %v297
    %299 = vmatmul.f32.gmra.mxu0 %v260
    %v300 = vpop.f32.mrf.mxu0
    %v301 = vadd.f32 0.0, %v300
    %302 = vmatmul.f32.gmra.mxu0 %v263
    %v303 = vpop.f32.mrf.mxu0
    %v304 = vadd.f32 0.0, %v303
    %305 = vdwg.mxu0
    %v307 = vsel %vm99, %v154, 0
    %v310 = vsel %vm99, %v157, 0
    %v313 = vsel %vm99, %v160, 0
    %v316 = vsel %vm99, %v163, 0
    %v319 = vsel %vm99, %v198, 0
    %v322 = vsel %vm99, %v201, 0
    %v325 = vsel %vm99, %v204, 0
    %v328 = vsel %vm99, %v207, 0
    %330 = vmatpush.xpose.msra.mxu0 0.0
    %331 = vmatpush.xpose.msra.mxu0 0.0
    %332 = vmatpush.xpose.msra.mxu0 0.0
    %333 = vmatpush.xpose.msra.mxu0 0.0
    %334 = vmatpush.xpose.msra.mxu0 0.0
    %335 = vmatpush.xpose.msra.mxu0 0.0
    %336 = vmatpush.xpose.msra.mxu0 0.0
    %337 = vmatpush.xpose.msra.mxu0 0.0
    %338 = vmatpush.xpose.msra.mxu0 0.0
    %339 = vmatpush.xpose.msra.mxu0 0.0
    %340 = vmatpush.xpose.msra.mxu0 0.0
    %341 = vmatpush.xpose.msra.mxu0 0.0
    %342 = vmatpush.xpose.msra.mxu0 %v328
    %343 = vmatpush.xpose.msra.mxu0 %v325
    %344 = vmatpush.xpose.msra.mxu0 %v322
    %345 = vmatpush.xpose.msra.mxu0 %v319
    %346 = vmatmul.f32.gmra.mxu0 %v307
    %v347 = vpop.f32.mrf.mxu0
    %v348 = vadd.f32 0.0, %v347
    %349 = vmatmul.f32.gmra.mxu0 %v310
    %v350 = vpop.f32.mrf.mxu0
    %v351 = vadd.f32 0.0, %v350
    %352 = vmatmul.f32.gmra.mxu0 %v313
    %v353 = vpop.f32.mrf.mxu0
    %v354 = vadd.f32 0.0, %v353
    %355 = vmatmul.f32.gmra.mxu0 %v316
    %v356 = vpop.f32.mrf.mxu0
    %v357 = vadd.f32 0.0, %v356
    %358 = vdwg.mxu0
    %v359 = vsel %vm99, %v295, -inf
    %360 = vmax.xlane.f32.xlu0 %v359
    %v361 = vpop.xlane.xlu0 %360
    %v362 = vsel %vm99, %v298, -inf
    %363 = vmax.xlane.f32.xlu0 %v362
    %v364 = vpop.xlane.xlu0 %363
    %v365 = vsel %vm99, %v301, -inf
    %366 = vmax.xlane.f32.xlu0 %v365
    %v367 = vpop.xlane.xlu0 %366
    %v368 = vsel %vm99, %v304, -inf
    %369 = vmax.xlane.f32.xlu0 %v368
    %v370 = vpop.xlane.xlu0 %369
    %v371 = vsel %vm99, %v348, -inf
    %372 = vmax.xlane.f32.xlu0 %v371
    %v373 = vpop.xlane.xlu0 %372
    %v374 = vsel %vm99, %v351, -inf
    %375 = vmax.xlane.f32.xlu0 %v374
    %v376 = vpop.xlane.xlu0 %375
    %v377 = vsel %vm99, %v354, -inf
    %378 = vmax.xlane.f32.xlu0 %v377
    %v379 = vpop.xlane.xlu0 %378
    %v380 = vsel %vm99, %v357, -inf
    %381 = vmax.xlane.f32.xlu0 %v380
    %v382 = vpop.xlane.xlu0 %381
    %v383 = vsub.f32 %v295, %v361
    %v384 = vsub.f32 %v298, %v364
    %v385 = vsub.f32 %v301, %v367
    %v386 = vsub.f32 %v304, %v370
    %v387 = vsub.f32 %v348, %v373
    %v388 = vsub.f32 %v351, %v376
    %v389 = vsub.f32 %v354, %v379
    %v390 = vsub.f32 %v357, %v382
    %v391 = vmul.f32 %v383, 1.442695
    %v392 = vpow.pop %v391
    %v393 = vmul.f32 %v384, 1.442695
    %v394 = vpow.pop %v393
    %v395 = vmul.f32 %v385, 1.442695
    %v396 = vpow.pop %v395
    %v397 = vmul.f32 %v386, 1.442695
    %v398 = vpow.pop %v397
    %v399 = vmul.f32 %v387, 1.442695
    %v400 = vpow.pop %v399
    %v401 = vmul.f32 %v388, 1.442695
    %v402 = vpow.pop %v401
    %v403 = vmul.f32 %v389, 1.442695
    %v404 = vpow.pop %v403
    %v405 = vmul.f32 %v390, 1.442695
    %v406 = vpow.pop %v405
    %v407 = vsel %vm99, %v392, 0.0
    %408 = vadd.xlane.f32.xlu0 %v407
    %v409 = vpop.xlane.xlu0 %408
    %v410 = vsel %vm99, %v394, 0.0
    %411 = vadd.xlane.f32.xlu0 %v410
    %v412 = vpop.xlane.xlu0 %411
    %v413 = vsel %vm99, %v396, 0.0
    %414 = vadd.xlane.f32.xlu0 %v413
    %v415 = vpop.xlane.xlu0 %414
    %v416 = vsel %vm99, %v398, 0.0
    %417 = vadd.xlane.f32.xlu0 %v416
    %v418 = vpop.xlane.xlu0 %417
    %v419 = vsel %vm99, %v400, 0.0
    %420 = vadd.xlane.f32.xlu0 %v419
    %v421 = vpop.xlane.xlu0 %420
    %v422 = vsel %vm99, %v402, 0.0
    %423 = vadd.xlane.f32.xlu0 %v422
    %v424 = vpop.xlane.xlu0 %423
    %v425 = vsel %vm99, %v404, 0.0
    %426 = vadd.xlane.f32.xlu0 %v425
    %v427 = vpop.xlane.xlu0 %426
    %v428 = vsel %vm99, %v406, 0.0
    %429 = vadd.xlane.f32.xlu0 %v428
    %v430 = vpop.xlane.xlu0 %429
    %v431 = vrcp.pop %v409
    %v432 = vmul.f32 %v409, %v431
    %v433 = vsub.f32 1.0, %v432
    %v434 = vmul.f32 %v431, %v433
    %v435 = vadd.f32 %v431, %v434
    %vm436 = vweird.f32 %v409
    %vm437 = vweird.f32 %v431
    %vm438 = vmor %vm436, %vm437
    %v439 = vsel %vm438, %v431, %v435
    %v440 = vand.u32 2147483647, %v409
    %vm441 = vcmp.eq.f32.partialorder %v440, 8.507059e+37
    %v442 = vand.u32 %v409, 2147483648
    %v443 = vor.u32 1.1754944e-38, %v442
    %v444 = vsel %vm441, %v443, %v439
    %v445 = vrcp.pop %v412
    %v446 = vmul.f32 %v412, %v445
    %v447 = vsub.f32 1.0, %v446
    %v448 = vmul.f32 %v445, %v447
    %v449 = vadd.f32 %v445, %v448
    %vm450 = vweird.f32 %v412
    %vm451 = vweird.f32 %v445
    %vm452 = vmor %vm450, %vm451
    %v453 = vsel %vm452, %v445, %v449
    %v454 = vand.u32 2147483647, %v412
    %vm455 = vcmp.eq.f32.partialorder %v454, 8.507059e+37
    %v456 = vand.u32 %v412, 2147483648
    %v457 = vor.u32 1.1754944e-38, %v456
    %v458 = vsel %vm455, %v457, %v453
    %v459 = vrcp.pop %v415
    %v460 = vmul.f32 %v415, %v459
    %v461 = vsub.f32 1.0, %v460
    %v462 = vmul.f32 %v459, %v461
    %v463 = vadd.f32 %v459, %v462
    %vm464 = vweird.f32 %v415
    %vm465 = vweird.f32 %v459
    %vm466 = vmor %vm464, %vm465
    %v467 = vsel %vm466, %v459, %v463
    %v468 = vand.u32 2147483647, %v415
    %vm469 = vcmp.eq.f32.partialorder %v468, 8.507059e+37
    %v470 = vand.u32 %v415, 2147483648
    %v471 = vor.u32 1.1754944e-38, %v470
    %v472 = vsel %vm469, %v471, %v467
    %v473 = vrcp.pop %v418
    %v474 = vmul.f32 %v418, %v473
    %v475 = vsub.f32 1.0, %v474
    %v476 = vmul.f32 %v473, %v475
    %v477 = vadd.f32 %v473, %v476
    %vm478 = vweird.f32 %v418
    %vm479 = vweird.f32 %v473
    %vm480 = vmor %vm478, %vm479
    %v481 = vsel %vm480, %v473, %v477
    %v482 = vand.u32 2147483647, %v418
    %vm483 = vcmp.eq.f32.partialorder %v482, 8.507059e+37
    %v484 = vand.u32 %v418, 2147483648
    %v485 = vor.u32 1.1754944e-38, %v484
    %v486 = vsel %vm483, %v485, %v481
    %v487 = vrcp.pop %v421
    %v488 = vmul.f32 %v421, %v487
    %v489 = vsub.f32 1.0, %v488
    %v490 = vmul.f32 %v487, %v489
    %v491 = vadd.f32 %v487, %v490
    %vm492 = vweird.f32 %v421
    %vm493 = vweird.f32 %v487
    %vm494 = vmor %vm492, %vm493
    %v495 = vsel %vm494, %v487, %v491
    %v496 = vand.u32 2147483647, %v421
    %vm497 = vcmp.eq.f32.partialorder %v496, 8.507059e+37
    %v498 = vand.u32 %v421, 2147483648
    %v499 = vor.u32 1.1754944e-38, %v498
    %v500 = vsel %vm497, %v499, %v495
    %v501 = vrcp.pop %v424
    %v502 = vmul.f32 %v424, %v501
    %v503 = vsub.f32 1.0, %v502
    %v504 = vmul.f32 %v501, %v503
    %v505 = vadd.f32 %v501, %v504
    %vm506 = vweird.f32 %v424
    %vm507 = vweird.f32 %v501
    %vm508 = vmor %vm506, %vm507
    %v509 = vsel %vm508, %v501, %v505
    %v510 = vand.u32 2147483647, %v424
    %vm511 = vcmp.eq.f32.partialorder %v510, 8.507059e+37
    %v512 = vand.u32 %v424, 2147483648
    %v513 = vor.u32 1.1754944e-38, %v512
    %v514 = vsel %vm511, %v513, %v509
    %v515 = vrcp.pop %v427
    %v516 = vmul.f32 %v427, %v515
    %v517 = vsub.f32 1.0, %v516
    %v518 = vmul.f32 %v515, %v517
    %v519 = vadd.f32 %v515, %v518
    %vm520 = vweird.f32 %v427
    %vm521 = vweird.f32 %v515
    %vm522 = vmor %vm520, %vm521
    %v523 = vsel %vm522, %v515, %v519
    %v524 = vand.u32 2147483647, %v427
    %vm525 = vcmp.eq.f32.partialorder %v524, 8.507059e+37
    %v526 = vand.u32 %v427, 2147483648
    %v527 = vor.u32 1.1754944e-38, %v526
    %v528 = vsel %vm525, %v527, %v523
    %v529 = vrcp.pop %v430
    %v530 = vmul.f32 %v430, %v529
    %v531 = vsub.f32 1.0, %v530
    %v532 = vmul.f32 %v529, %v531
    %v533 = vadd.f32 %v529, %v532
    %vm534 = vweird.f32 %v430
    %vm535 = vweird.f32 %v529
    %vm536 = vmor %vm534, %vm535
    %v537 = vsel %vm536, %v529, %v533
    %v538 = vand.u32 2147483647, %v430
    %vm539 = vcmp.eq.f32.partialorder %v538, 8.507059e+37
    %v540 = vand.u32 %v430, 2147483648
    %v541 = vor.u32 1.1754944e-38, %v540
    %v542 = vsel %vm539, %v541, %v537
    %v543 = vmul.f32 %v392, %v444
    %v544 = vmul.f32 %v394, %v458
    %v545 = vmul.f32 %v396, %v472
    %v546 = vmul.f32 %v398, %v486
    %v547 = vmul.f32 %v400, %v500
    %v548 = vmul.f32 %v402, %v514
    %v549 = vmul.f32 %v404, %v528
    %v550 = vmul.f32 %v406, %v542
    %v552 = vsel %vm99, %v543, 0
    %v555 = vsel %vm99, %v544, 0
    %v558 = vsel %vm99, %v545, 0
    %v561 = vsel %vm99, %v546, 0
    %563 = vmatpush.msra.mxu0 0.0
    %564 = vmatpush.msra.mxu0 0.0
    %565 = vmatpush.msra.mxu0 0.0
    %566 = vmatpush.msra.mxu0 0.0
    %567 = vmatpush.msra.mxu0 0.0
    %568 = vmatpush.msra.mxu0 0.0
    %569 = vmatpush.msra.mxu0 0.0
    %570 = vmatpush.msra.mxu0 0.0
    %571 = vmatpush.msra.mxu0 0.0
    %572 = vmatpush.msra.mxu0 0.0
    %573 = vmatpush.msra.mxu0 0.0
    %574 = vmatpush.msra.mxu0 0.0
    %575 = vmatpush.msra.mxu0 %v239
    %576 = vmatpush.msra.mxu0 %v236
    %577 = vmatpush.msra.mxu0 %v233
    %578 = vmatpush.msra.mxu0 %v230
    %579 = vmatmul.f32.gmra.mxu0 %v552
    %v580 = vpop.f32.mrf.mxu0
    %v581 = vadd.f32 0.0, %v580
    %582 = vmatmul.f32.gmra.mxu0 %v555
    %v583 = vpop.f32.mrf.mxu0
    %v584 = vadd.f32 0.0, %v583
    %585 = vmatmul.f32.gmra.mxu0 %v558
    %v586 = vpop.f32.mrf.mxu0
    %v587 = vadd.f32 0.0, %v586
    %588 = vmatmul.f32.gmra.mxu0 %v561
    %v589 = vpop.f32.mrf.mxu0
    %v590 = vadd.f32 0.0, %v589
    %591 = vdwg.mxu0
    %v593 = vsel %vm99, %v547, 0
    %v596 = vsel %vm99, %v548, 0
    %v599 = vsel %vm99, %v549, 0
    %v602 = vsel %vm99, %v550, 0
    %604 = vmatpush.msra.mxu0 0.0
    %605 = vmatpush.msra.mxu0 0.0
    %606 = vmatpush.msra.mxu0 0.0
    %607 = vmatpush.msra.mxu0 0.0
    %608 = vmatpush.msra.mxu0 0.0
    %609 = vmatpush.msra.mxu0 0.0
    %610 = vmatpush.msra.mxu0 0.0
    %611 = vmatpush.msra.mxu0 0.0
    %612 = vmatpush.msra.mxu0 0.0
    %613 = vmatpush.msra.mxu0 0.0
    %614 = vmatpush.msra.mxu0 0.0
    %615 = vmatpush.msra.mxu0 0.0
    %616 = vmatpush.msra.mxu0 %v251
    %617 = vmatpush.msra.mxu0 %v248
    %618 = vmatpush.msra.mxu0 %v245
    %619 = vmatpush.msra.mxu0 %v242
    %620 = vmatmul.f32.gmra.mxu0 %v593
    %v621 = vpop.f32.mrf.mxu0
    %v622 = vadd.f32 0.0, %v621
    %623 = vmatmul.f32.gmra.mxu0 %v596
    %v624 = vpop.f32.mrf.mxu0
    %v625 = vadd.f32 0.0, %v624
    %626 = vmatmul.f32.gmra.mxu0 %v599
    %v627 = vpop.f32.mrf.mxu0
    %v628 = vadd.f32 0.0, %v627
    %629 = vmatmul.f32.gmra.mxu0 %v602
    %v630 = vpop.f32.mrf.mxu0
    %v631 = vadd.f32 0.0, %v630
    %632 = vdwg.mxu0
    %v634 = vperm.slane %v95, 0
    %v637 = vsel %vm99, %v581, 0
    %v640 = vsel %vm99, %v584, 0
    %v643 = vsel %vm99, %v587, 0
    %v646 = vsel %vm99, %v590, 0
    %v649 = vsel %vm99, %v622, 0
    %v652 = vsel %vm99, %v625, 0
    %v655 = vsel %vm99, %v628, 0
    %v658 = vsel %vm99, %v631, 0
    %660 = vmatpush.msra.mxu0 0.0
    %661 = vmatpush.msra.mxu0 0.0
    %662 = vmatpush.msra.mxu0 0.0
    %663 = vmatpush.msra.mxu0 0.0
    %664 = vmatpush.msra.mxu0 0.0
    %665 = vmatpush.msra.mxu0 0.0
    %666 = vmatpush.msra.mxu0 0.0
    %667 = vmatpush.msra.mxu0 0.0
    %668 = vmatpush.msra.mxu0 0.0
    %669 = vmatpush.msra.mxu0 0.0
    %670 = vmatpush.msra.mxu0 0.0
    %671 = vmatpush.msra.mxu0 0.0
    %672 = vmatpush.msra.mxu0 %v88
    %673 = vmatpush.msra.mxu0 %v87
    %674 = vmatpush.msra.mxu0 %v86
    %675 = vmatpush.msra.mxu0 %v85
    %676 = vmatmul.f32.gmra.mxu0 %v637
    %v677 = vpop.f32.mrf.mxu0
    %v678 = vadd.f32 %v634, %v677
    %679 = vmatmul.f32.gmra.mxu0 %v640
    %v680 = vpop.f32.mrf.mxu0
    %v681 = vadd.f32 %v634, %v680
    %682 = vmatmul.f32.gmra.mxu0 %v643
    %v683 = vpop.f32.mrf.mxu0
    %v684 = vadd.f32 %v634, %v683
    %685 = vmatmul.f32.gmra.mxu0 %v646
    %v686 = vpop.f32.mrf.mxu0
    %v687 = vadd.f32 %v634, %v686
    %688 = vmatmul.f32.gmra.mxu0 %v649
    %v689 = vpop.f32.mrf.mxu0
    %v690 = vadd.f32 %v634, %v689
    %691 = vmatmul.f32.gmra.mxu0 %v652
    %v692 = vpop.f32.mrf.mxu0
    %v693 = vadd.f32 %v634, %v692
    %694 = vmatmul.f32.gmra.mxu0 %v655
    %v695 = vpop.f32.mrf.mxu0
    %v696 = vadd.f32 %v634, %v695
    %697 = vmatmul.f32.gmra.mxu0 %v658
    %v698 = vpop.f32.mrf.mxu0
    %v699 = vadd.f32 %v634, %v698
    %700 = vdwg.mxu0
    %701 = vst.msk [vmem:[#allocation8] sm:$0xff] %vm99, %v678
    %702 = vst.msk [vmem:[#allocation8 + $0x8] sm:$0xff] %vm99, %v681
    %703 = vst.msk [vmem:[#allocation8 + $0x10] sm:$0xff] %vm99, %v684
    %704 = vst.msk [vmem:[#allocation8 + $0x18] sm:$0xff] %vm99, %v687
    %705 = vst.msk [vmem:[#allocation8 + $0x20] sm:$0xff] %vm99, %v690
    %706 = vst.msk [vmem:[#allocation8 + $0x28] sm:$0xff] %vm99, %v693
    %707 = vst.msk [vmem:[#allocation8 + $0x30] sm:$0xff] %vm99, %v696
    %708 = vst.msk [vmem:[#allocation8 + $0x38] sm:$0xff] %vm99, %v699
    // Predicated region
    $region26: #{model_forward.1} parent=1 // pred_check
      _
    $region27: #{model_forward.1} parent=1 // pred_check_branch
      %710 = sbr.rel (0) target = $region29
    $region28: #{model_forward.1} parent=1 // pred_region
      %712 = vsyncadd [#allocation4], 0
      %s713 = sshll.u32 [#allocation8], 4
      %s714 = int_to_ptr.vmem [resolvable:$true] %s713
      %s715 = sshll.u32 %s3, 4
      %s716 = int_to_ptr.hbm [resolvable:$true] %s715
      %721 = dma.vmem_to_hbm [thread:$0]  %s714, 1024, %s716, [#allocation4], 128, 128, 8
    $region29: #{model_forward.1} parent=1 // pred_fallthru
      _
    // Predicated region
    $region30: #{model_forward.1} parent=1 // pred_check
      _
    $region31: #{model_forward.1} parent=1 // pred_check_branch
      %723 = sbr.rel (0) target = $region33
    $region32: #{model_forward.1} parent=1 // pred_region
      %725 = dma.done [#allocation4], 1024
    $region33: #{model_forward.1} parent=1 // pred_fallthru
      _
    %726 = vsyncpa [#allocation3], 1
    %727 = vsyncpa [#allocation6], 1
    %728 = vsyncpa [#allocation4], 1

</llo_original>
